<compile_context>
chip_gen: v6e
topology: v6e:2x2x1
jax: 0.10.0
libtpu: 0.0.40
codegen_flags: <defaults>
</compile_context>

<pallas_src>
import functools

import jax
import jax.numpy as jnp
from jax.experimental import pallas as pl
from jax.experimental.pallas import tpu as pltpu

_LANES = 128
_MAX_ROW_TILE = 1024  # 1024 x 128 f32 = 512 KiB per input buffer


def _focal_elementwise(x, t, *, alpha, gamma, logits):
    """Per-element focal loss in f32 (x, t already cast to f32)."""
    if logits:
        # Numerically stable BCE-with-logits: max(x,0) - x*t + log1p(exp(-|x|))
        bce = jnp.maximum(x, 0.0) - x * t + jnp.log1p(jnp.exp(-jnp.abs(x)))
    else:
        # PyTorch's binary_cross_entropy clamps log() at -100.
        log_p = jnp.maximum(jnp.log(x), -100.0)
        log_1mp = jnp.maximum(jnp.log(1.0 - x), -100.0)
        bce = -(t * log_p + (1.0 - t) * log_1mp)
    pt = jnp.exp(-bce)
    one_minus_pt = 1.0 - pt
    g = float(gamma)
    if g == int(g) and g >= 0:
        mod = jax.lax.integer_pow(one_minus_pt, int(g))  # VPU multiplies
    else:
        mod = jnp.power(one_minus_pt, g)
    return alpha * mod * bce


def _focal_mean_kernel(x_ref, t_ref, out_ref, acc_ref, *,
                       alpha, gamma, logits, n, row_tile):
    i = pl.program_id(0)

    @pl.when(i == 0)
    def _():
        acc_ref[...] = jnp.zeros_like(acc_ref)

    x = x_ref[...].astype(jnp.float32)
    t = t_ref[...].astype(jnp.float32)
    f_loss = _focal_elementwise(x, t, alpha=alpha, gamma=gamma, logits=logits)

    # Mask the ragged tail (and any out-of-bounds rows of a partial block).
    row_ids = jax.lax.broadcasted_iota(jnp.int32, x.shape, 0)
    lane_ids = jax.lax.broadcasted_iota(jnp.int32, x.shape, 1)
    global_idx = (i * row_tile + row_ids) * _LANES + lane_ids
    f_loss = jnp.where(global_idx < n, f_loss, 0.0)

    # Vector accumulation (pure VPU adds, hidden under the DMA).
    acc_ref[...] += f_loss

    @pl.when(i == pl.num_programs(0) - 1)
    def _():
        # Single cross-lane reduce + mean at the very end.
        out_ref[0, 0] = jnp.sum(acc_ref[...]) * (1.0 / n)


def _focal_map_kernel(x_ref, t_ref, o_ref, *, alpha, gamma, logits):
    x = x_ref[...].astype(jnp.float32)
    t = t_ref[...].astype(jnp.float32)
    o_ref[...] = _focal_elementwise(x, t, alpha=alpha, gamma=gamma, logits=logits)


def _to_slab(a, n_padded):
    flat = jnp.reshape(a, (-1,))
    pad = n_padded - flat.shape[0]
    if pad:
        # Only a <128-element lane remainder is ever padded; in-kernel masking
        # handles correctness, so zeros (in the native dtype) are fine.
        flat = jnp.concatenate([flat, jnp.zeros((pad,), dtype=flat.dtype)])
    return flat.reshape(n_padded // _LANES, _LANES)


def focal_loss(inputs, targets, alpha=1.0, gamma=2.0, logits=False, reduce=True):
    """Pallas TPU implementation of FocalLoss.forward."""
    n = int(inputs.size)
    rows = pl.cdiv(n, _LANES)
    n_padded = rows * _LANES
    row_tile = min(_MAX_ROW_TILE, ((rows + 7) // 8) * 8)  # sublane-aligned
    grid = (pl.cdiv(rows, row_tile),)

    # Native dtype slabs; cast to f32 happens inside the kernel.
    x2 = _to_slab(inputs, n_padded)
    t2 = _to_slab(targets, n_padded)

    if reduce:
        kernel = functools.partial(
            _focal_mean_kernel, alpha=float(alpha), gamma=float(gamma),
            logits=bool(logits), n=n, row_tile=row_tile)
        out = pl.pallas_call(
            kernel,
            out_shape=jax.ShapeDtypeStruct((1, 1), jnp.float32),
            grid_spec=pltpu.PrefetchScalarGridSpec(
                num_scalar_prefetch=0,
                grid=grid,
                in_specs=[
                    pl.BlockSpec((row_tile, _LANES), lambda i: (i, 0)),
                    pl.BlockSpec((row_tile, _LANES), lambda i: (i, 0)),
                ],
                out_specs=pl.BlockSpec((1, 1), lambda i: (0, 0),
                                       memory_space=pltpu.SMEM),
                scratch_shapes=[pltpu.VMEM((row_tile, _LANES), jnp.float32)],
            ),
            compiler_params=pltpu.CompilerParams(
                dimension_semantics=("arbitrary",)),  # reduction axis
        )(x2, t2)
        return out[0, 0]

    # reduce=False: per-element focal loss, same shape as inputs.
    kernel = functools.partial(
        _focal_map_kernel, alpha=float(alpha), gamma=float(gamma),
        logits=bool(logits))
    out2d = pl.pallas_call(
        kernel,
        out_shape=jax.ShapeDtypeStruct((rows, _LANES), jnp.float32),
        grid_spec=pltpu.PrefetchScalarGridSpec(
            num_scalar_prefetch=0,
            grid=grid,
            in_specs=[
                pl.BlockSpec((row_tile, _LANES), lambda i: (i, 0)),
                pl.BlockSpec((row_tile, _LANES), lambda i: (i, 0)),
            ],
            out_specs=pl.BlockSpec((row_tile, _LANES), lambda i: (i, 0)),
        ),
        compiler_params=pltpu.CompilerParams(
            dimension_semantics=("parallel",)),
    )(x2, t2)
    return out2d.reshape(-1)[:n].reshape(inputs.shape)


def _reference_focal_loss(inputs, targets, alpha=1.0, gamma=2.0,
                          logits=False, reduce=True):
    x = inputs.astype(jnp.float32)
    t = targets.astype(jnp.float32)
    if logits:
        bce = jnp.maximum(x, 0.0) - x * t + jnp.log1p(jnp.exp(-jnp.abs(x)))
    else:
        bce = -(t * jnp.maximum(jnp.log(x), -100.0)
                + (1.0 - t) * jnp.maximum(jnp.log(1.0 - x), -100.0))
    pt = jnp.exp(-bce)
    f_loss = alpha * (1.0 - pt) ** gamma * bce
    return jnp.mean(f_loss) if reduce else f_loss


if __name__ == "__main__":
    key = jax.random.PRNGKey(0)
    k1, k2 = jax.random.split(key)

    shape = (2, 4, 16, 16)  # NCHW, as the segmentation module expects
    raw = jax.random.normal(k1, shape, dtype=jnp.float32)       # logits
    probs = jax.nn.sigmoid(raw)                                  # probabilities
    targets = (jax.random.uniform(k2, shape) > 0.5).astype(jnp.float32)

    # Default module config: alpha=1, gamma=2, logits=False, reduce=True.
    loss = focal_loss(probs, targets)
    loss = jax.block_until_ready(loss)
    ref = _reference_focal_loss(probs, targets)
    assert jnp.allclose(loss, ref, atol=1e-5, rtol=1e-5), (loss, ref)

    # logits=True variant.
    loss_l = focal_loss(raw, targets, logits=True)
    loss_l = jax.block_until_ready(loss_l)
    ref_l = _reference_focal_loss(raw, targets, logits=True)
    assert jnp.allclose(loss_l, ref_l, atol=1e-5, rtol=1e-5), (loss_l, ref_l)

    # reduce=False variant (per-element focal loss, same shape as inputs).
    fl = focal_loss(probs, targets, reduce=False)
    fl = jax.block_until_ready(fl)
    ref_fl = _reference_focal_loss(probs, targets, reduce=False)
    assert fl.shape == shape
    assert jnp.allclose(fl, ref_fl, atol=1e-5, rtol=1e-5)

    print("KERNEL_OK")
</pallas_src>

<mosaic_0001>
module attributes {stable_mosaic.version = 11 : i64} {
  func.func @_focal_mean_kernel(%arg0: i32, %arg1: memref<16x128xf32, #tpu.memory_space<vmem>>, %arg2: memref<16x128xf32, #tpu.memory_space<vmem>>, %arg3: memref<1x1xf32, #tpu.memory_space<smem>>, %arg4: memref<16x128xf32, #tpu.memory_space<vmem>>) attributes {dimension_semantics = [#tpu.dimension_semantics<arbitrary>], iteration_bounds = array<i64: 1>, scalar_prefetch = 0 : i64, scratch_operands = 1 : i64, tpu.core_type = #tpu.core_type<tc>, window_params = [{transform_indices = @transform_0, window_bounds = array<i64: 16, 128>}, {transform_indices = @transform_1, window_bounds = array<i64: 16, 128>}, {transform_indices = @transform_2, window_bounds = array<i64: 1, 1>}]} {
    %c0_i32 = arith.constant 0 : i32
    %0 = arith.cmpi eq, %arg0, %c0_i32 : i32
    %1 = arith.extui %0 : i1 to i32
    %c0_i32_0 = arith.constant 0 : i32
    %2 = arith.cmpi ne, %1, %c0_i32_0 : i32
    scf.if %2 {
      %cst_18 = arith.constant 0.000000e+00 : f32
      %47 = vector.broadcast %cst_18 : f32 to vector<16x128xf32>
      %c0_19 = arith.constant 0 : index
      %c0_20 = arith.constant 0 : index
      %48 = vector.load %arg4[%c0_19, %c0_20] : memref<16x128xf32, #tpu.memory_space<vmem>>, vector<16x128xf32>
      tpu.vector_store %arg4[%c0_19, %c0_20], %47 {strides = array<i32>} : memref<16x128xf32, #tpu.memory_space<vmem>>, vector<16x128xf32>,
    } else {
    }
    %c0 = arith.constant 0 : index
    %c0_1 = arith.constant 0 : index
    %3 = vector.load %arg1[%c0, %c0_1] : memref<16x128xf32, #tpu.memory_space<vmem>>, vector<16x128xf32>
    %c0_2 = arith.constant 0 : index
    %c0_3 = arith.constant 0 : index
    %4 = vector.load %arg2[%c0_2, %c0_3] : memref<16x128xf32, #tpu.memory_space<vmem>>, vector<16x128xf32>
    %5 = math.log %3 : vector<16x128xf32>
    %cst = arith.constant -1.000000e+02 : f32
    %6 = vector.broadcast %cst : f32 to vector<16x128xf32>
    %7 = arith.maximumf %5, %6 : vector<16x128xf32>
    %cst_4 = arith.constant 1.000000e+00 : f32
    %8 = vector.broadcast %cst_4 : f32 to vector<16x128xf32>
    %9 = arith.subf %8, %3 : vector<16x128xf32>
    %10 = math.log %9 : vector<16x128xf32>
    %cst_5 = arith.constant -1.000000e+02 : f32
    %11 = vector.broadcast %cst_5 : f32 to vector<16x128xf32>
    %12 = arith.maximumf %10, %11 : vector<16x128xf32>
    %13 = arith.mulf %4, %7 : vector<16x128xf32>
    %cst_6 = arith.constant 1.000000e+00 : f32
    %14 = vector.broadcast %cst_6 : f32 to vector<16x128xf32>
    %15 = arith.subf %14, %4 : vector<16x128xf32>
    %16 = arith.mulf %15, %12 : vector<16x128xf32>
    %17 = arith.addf %13, %16 : vector<16x128xf32>
    %cst_7 = arith.constant 0.000000e+00 : f32
    %18 = vector.broadcast %cst_7 : f32 to vector<16x128xf32>
    %19 = arith.subf %18, %17 : vector<16x128xf32>
    %cst_8 = arith.constant 0.000000e+00 : f32
    %20 = vector.broadcast %cst_8 : f32 to vector<16x128xf32>
    %21 = arith.subf %20, %19 : vector<16x128xf32>
    %22 = math.exp %21 : vector<16x128xf32>
    %cst_9 = arith.constant 1.000000e+00 : f32
    %23 = vector.broadcast %cst_9 : f32 to vector<16x128xf32>
    %24 = arith.subf %23, %22 : vector<16x128xf32>
    %25 = arith.mulf %24, %24 : vector<16x128xf32>
    %cst_10 = arith.constant 1.000000e+00 : f32
    %26 = vector.broadcast %cst_10 : f32 to vector<16x128xf32>
    %27 = arith.mulf %26, %25 : vector<16x128xf32>
    %28 = arith.mulf %27, %19 : vector<16x128xf32>
    %29 = tpu.iota {dimensions = array<i32: 0>} : vector<16x128xi32>
    %30 = tpu.iota {dimensions = array<i32: 1>} : vector<16x128xi32>
    %c16_i32 = arith.constant 16 : i32
    %31 = arith.muli %arg0, %c16_i32 : i32
    %32 = vector.broadcast %31 : i32 to vector<16x128xi32>
    %33 = arith.addi %32, %29 : vector<16x128xi32>
    %c128_i32 = arith.constant 128 : i32
    %34 = vector.broadcast %c128_i32 : i32 to vector<16x128xi32>
    %35 = arith.muli %33, %34 : vector<16x128xi32>
    %36 = arith.addi %35, %30 : vector<16x128xi32>
    %c2048_i32 = arith.constant 2048 : i32
    %37 = vector.broadcast %c2048_i32 : i32 to vector<16x128xi32>
    %38 = arith.cmpi slt, %36, %37 : vector<16x128xi32>
    %cst_11 = arith.constant 0.000000e+00 : f32
    %39 = vector.broadcast %cst_11 : f32 to vector<16x128xf32>
    %40 = arith.select %38, %28, %39 : vector<16x128xi1>, vector<16x128xf32>
    %c0_12 = arith.constant 0 : index
    %c0_13 = arith.constant 0 : index
    %41 = vector.load %arg4[%c0_12, %c0_13] : memref<16x128xf32, #tpu.memory_space<vmem>>, vector<16x128xf32>
    %42 = arith.addf %41, %40 : vector<16x128xf32>
    %c0_14 = arith.constant 0 : index
    %c0_15 = arith.constant 0 : index
    %43 = vector.load %arg4[%c0_14, %c0_15] : memref<16x128xf32, #tpu.memory_space<vmem>>, vector<16x128xf32>
    tpu.vector_store %arg4[%c0_14, %c0_15], %42 {strides = array<i32>} : memref<16x128xf32, #tpu.memory_space<vmem>>, vector<16x128xf32>,
    %c0_i32_16 = arith.constant 0 : i32
    %44 = arith.cmpi eq, %arg0, %c0_i32_16 : i32
    %45 = arith.extui %44 : i1 to i32
    %c0_i32_17 = arith.constant 0 : i32
    %46 = arith.cmpi ne, %45, %c0_i32_17 : i32
    scf.if %46 {
      %c0_18 = arith.constant 0 : index
      %c0_19 = arith.constant 0 : index
      %47 = vector.load %arg4[%c0_18, %c0_19] : memref<16x128xf32, #tpu.memory_space<vmem>>, vector<16x128xf32>
      %48 = vector.shape_cast %47 : vector<16x128xf32> to vector<1x16x128xf32>
      %cst_20 = arith.constant dense<0.000000e+00> : vector<1xf32>
      %49 = vector.multi_reduction <add>, %48, %cst_20 [1, 2] : vector<1x16x128xf32> to vector<1xf32>
      %50 = vector.shape_cast %49 : vector<1xf32> to vector<1x1x1xf32>
      %51 = vector.extract %50[0, 0, 0] : f32 from vector<1x1x1xf32>
      %cst_21 = arith.constant 4.8828125E-4 : f32
      %52 = arith.mulf %51, %cst_21 : f32
      %c0_22 = arith.constant 0 : index
      %c0_23 = arith.constant 0 : index
      %53 = memref.load %arg3[%c0_22, %c0_23] : memref<1x1xf32, #tpu.memory_space<smem>>
      memref.store %52, %arg3[%c0_22, %c0_23] : memref<1x1xf32, #tpu.memory_space<smem>>
    } else {
    }
    return
  }
  func.func @transform_0(%arg0: i32) -> (i32, i32) {
    %c0_i32 = arith.constant 0 : i32
    %c0_i32_0 = arith.constant 0 : i32
    return %arg0, %c0_i32 : i32, i32
  }
  func.func @transform_1(%arg0: i32) -> (i32, i32) {
    %c0_i32 = arith.constant 0 : i32
    %c0_i32_0 = arith.constant 0 : i32
    return %arg0, %c0_i32 : i32, i32
  }
  func.func @transform_2(%arg0: i32) -> (i32, i32) {
    %c0_i32 = arith.constant 0 : i32
    %c0_i32_0 = arith.constant 0 : i32
    %c0_i32_1 = arith.constant 0 : i32
    return %c0_i32, %c0_i32_0 : i32, i32
  }
}

</mosaic_0001>

<llo_original>
// kernel: tpu_custom_call.1
$region0: #{tpu_custom_call.1}
  #allocation0 [shape = 'u32[]', space=smem, size = 0x4, offset = 0x4, fixed_abs, tag = 'smem constant byte address 0x4 - core index']
  #allocation1 [shape = 'u32[144,128]{1,0:T(1,128)}', space=vmem, size = 0x12000, scoped, tag = 'internal scratch']
  #allocation2 [shape = 'f32[16,128]{1,0:T(8,128)}', space=vmem, size = 0x2000, scoped, tag = 'scratch operand']
  %s0 = inlined_call_operand.hbm [shape: f32[16,128], index: 0, kind: input, shape index: {}]
  %s1 = inlined_call_operand.hbm [shape: f32[16,128], index: 1, kind: input, shape index: {}]
  %s2 = inlined_call_operand.hbm [shape: f32[1,1], index: 2, kind: output, shape index: {}]
  %s3 = sld [smem:[#allocation0]]
  $region34: #{tpu_custom_call.1} parent=0
    _
  %s5 = ssub.s32 1, %s3
  %s6 = scalar_select 0, %s5, %s3
  $region1: #{tpu_custom_call.1} parent=0
    #allocation3 [shape = 'u8[8192]{0}', space=vmem, size = 0x2000, scoped, tag = 'input window, operand 0, single buffered']
    #allocation4 [shape = 's32[1]{0}', space=sflag, size = 0x4, scoped, tag = 'scoped memory for tpu_custom_call.1']
    #allocation5 [shape = 's32[1]{0}', space=sflag, size = 0x4, scoped, tag = 'scoped memory for tpu_custom_call.1']
    #allocation6 [shape = 'u8[8192]{0}', space=vmem, size = 0x2000, scoped, tag = 'input window, operand 1, single buffered']
    #allocation7 [shape = 's32[1]{0}', space=sflag, size = 0x4, scoped, tag = 'scoped memory for tpu_custom_call.1']
    #allocation8 [shape = 'u8[512]{0}', space=smem, size = 0x200, scoped, tag = 'output window, operand 0, single buffered']
    %7 = vsyncpa [#allocation4], 0
    %8 = vsyncpa [#allocation7], 0
    %9 = vsyncpa [#allocation5], 0
    // Predicated region
    $region2: #{tpu_custom_call.1} parent=1 // pred_check
      _
    $region3: #{tpu_custom_call.1} parent=1 // pred_check_branch
      %11 = sbr.rel (0) target = $region5
    $region4: #{tpu_custom_call.1} parent=1 // pred_region
      %s13 = ssub.s32 256, 256
      %14 = vsyncadd [#allocation4], %s13
      %s15 = sshll.u32 [#allocation3], 4
      %s16 = int_to_ptr.vmem [resolvable:$true] %s15
      %21 = dma.hbm_to_vmem [thread:$0]  %s0, 256, %s16, [#allocation4], 128, 128, 8
    $region5: #{tpu_custom_call.1} parent=1 // pred_fallthru
      _
    // Predicated region
    $region6: #{tpu_custom_call.1} parent=1 // pred_check
      _
    $region7: #{tpu_custom_call.1} parent=1 // pred_check_branch
      %23 = sbr.rel (0) target = $region9
    $region8: #{tpu_custom_call.1} parent=1 // pred_region
      %s25 = ssub.s32 256, 256
      %26 = vsyncadd [#allocation7], %s25
      %s27 = sshll.u32 [#allocation6], 4
      %s28 = int_to_ptr.vmem [resolvable:$true] %s27
      %33 = dma.hbm_to_vmem [thread:$0]  %s1, 256, %s28, [#allocation7], 128, 128, 8
    $region9: #{tpu_custom_call.1} parent=1 // pred_fallthru
      _
    // Predicated region
    $region10: #{tpu_custom_call.1} parent=1 // pred_check
      _
    $region11: #{tpu_custom_call.1} parent=1 // pred_check_branch
      %35 = sbr.rel (0) target = $region13
    $region12: #{tpu_custom_call.1} parent=1 // pred_region
      %36 = dma.done [#allocation4], 256
    $region13: #{tpu_custom_call.1} parent=1 // pred_fallthru
      _
    // Predicated region
    $region14: #{tpu_custom_call.1} parent=1 // pred_check
      _
    $region15: #{tpu_custom_call.1} parent=1 // pred_check_branch
      %38 = sbr.rel (0) target = $region17
    $region16: #{tpu_custom_call.1} parent=1 // pred_region
      %39 = dma.done [#allocation7], 256
    $region17: #{tpu_custom_call.1} parent=1 // pred_fallthru
      _
    %p40 = scmp.eq.s32.totalorder 0, 0
    // Predicated region
    $region18: #{tpu_custom_call.1} parent=1 // pred_check
      %p41 = pneg %p40
    $region19: #{tpu_custom_call.1} parent=1 // pred_check_branch
      %43 = sbr.rel (%p41) target = $region21
    $region20: #{tpu_custom_call.1} parent=1 // pred_region
      %44 = vst [vmem:[#allocation2] sm:$0xff] 0.0
      %45 = vst [vmem:[#allocation2 + $0x8] sm:$0xff] 0.0
    $region21: #{tpu_custom_call.1} parent=1 // pred_fallthru
      _
    %v46 = vld [vmem:[#allocation3] sm:$0xff]
    %v47 = vld [vmem:[#allocation3 + $0x8] sm:$0xff]
    %v48 = vld [vmem:[#allocation6] sm:$0xff]
    %v49 = vld [vmem:[#allocation6 + $0x8] sm:$0xff]
    %v50 = vlog2.pop %v46
    %v51 = vmul.f32 %v50, 0.6931472
    %v52 = vlog2.pop %v47
    %v53 = vmul.f32 %v52, 0.6931472
    %v54 = vmax.f32 %v51, -100.0
    %v55 = vmax.f32 %v53, -100.0
    %v56 = vsub.f32 1.0, %v46
    %v57 = vsub.f32 1.0, %v47
    %v58 = vlog2.pop %v56
    %v59 = vmul.f32 %v58, 0.6931472
    %v60 = vlog2.pop %v57
    %v61 = vmul.f32 %v60, 0.6931472
    %v62 = vmax.f32 %v59, -100.0
    %v63 = vmax.f32 %v61, -100.0
    %v64 = vmul.f32 %v48, %v54
    %v65 = vmul.f32 %v49, %v55
    %v66 = vsub.f32 1.0, %v48
    %v67 = vsub.f32 1.0, %v49
    %v68 = vmul.f32 %v66, %v62
    %v69 = vmul.f32 %v67, %v63
    %v70 = vadd.f32 %v64, %v68
    %v71 = vadd.f32 %v65, %v69
    %v72 = vsub.f32 0.0, %v70
    %v73 = vsub.f32 0.0, %v71
    %v74 = vsub.f32 0.0, %v72
    %v75 = vsub.f32 0.0, %v73
    %v76 = vmul.f32 %v74, 1.442695
    %v77 = vpow.pop %v76
    %v78 = vmul.f32 %v75, 1.442695
    %v79 = vpow.pop %v78
    %v80 = vsub.f32 1.0, %v77
    %v81 = vsub.f32 1.0, %v79
    %v82 = vmul.f32 %v80, %v80
    %v83 = vmul.f32 %v81, %v81
    %v84 = vmul.f32 %v82, %v72
    %v85 = vmul.f32 %v83, %v73
    %v86 = vlaneseq
    %v87 = vshrl.u32 %v86, 7
    %v88 = vadd.s32 %v87, 8
    %v89 = vlaneseq
    %v90 = vand.u32 %v89, 127
    %s91 = smul.u32 0, 16
    %v92 = vstv %s91
    %v93 = vadd.s32 %v92, %v87
    %v94 = vadd.s32 %v92, %v88
    %v95 = vmul.u32 %v93, 128
    %v96 = vmul.u32 %v94, 128
    %v97 = vadd.s32 %v95, %v90
    %v98 = vadd.s32 %v96, %v90
    %vm99 = vcmp.lt.s32.totalorder %v97, 2048
    %vm100 = vcmp.lt.s32.totalorder %v98, 2048
    %v101 = vsel %vm99, %v84, 0.0
    %v102 = vsel %vm100, %v85, 0.0
    %v103 = vld [vmem:[#allocation2] sm:$0xff]
    %v104 = vld [vmem:[#allocation2 + $0x8] sm:$0xff]
    %v105 = vadd.f32 %v103, %v101
    %v106 = vadd.f32 %v104, %v102
    %107 = vst [vmem:[#allocation2] sm:$0xff] %v105
    %108 = vst [vmem:[#allocation2 + $0x8] sm:$0xff] %v106
    // Predicated region
    $region22: #{tpu_custom_call.1} parent=1 // pred_check
      %p109 = pneg %p40
    $region23: #{tpu_custom_call.1} parent=1 // pred_check_branch
      %111 = sbr.rel (%p109) target = $region25
    $region24: #{tpu_custom_call.1} parent=1 // pred_region
      %v112 = vld [vmem:[#allocation2] sm:$0xff]
      %v113 = vld [vmem:[#allocation2 + $0x8] sm:$0xff]
      %v114 = vadd.f32 %v112, %v113
      %115 = vadd.xlane.f32.xlu0 %v114
      %v116 = vpop.xlane.xlu0 %115
      %v117 = vrot.slane %v116, 4
      %v118 = vadd.f32 %v116, %v117
      %v119 = vrot.slane %v118, 2
      %v120 = vadd.f32 %v118, %v119
      %v121 = vrot.slane %v120, 1
      %v122 = vadd.f32 %v120, %v121
      %s123 = vtos %v122
      %s124 = smul.f32 %s123, 0.00048828125
      %s125 = scalar_lea.smem [#allocation8], 0
      %126 = sst [smem:[%s125]] %s124
    $region25: #{tpu_custom_call.1} parent=1 // pred_fallthru
      _
    // Predicated region
    $region26: #{tpu_custom_call.1} parent=1 // pred_check
      _
    $region27: #{tpu_custom_call.1} parent=1 // pred_check_branch
      %128 = sbr.rel (0) target = $region29
    $region28: #{tpu_custom_call.1} parent=1 // pred_region
      %s130 = ssub.s32 16, 16
      %131 = vsyncadd [#allocation5], %s130
      %134 = dma.smem_to_hbm [#allocation8], 16, %s2, [#allocation5]
    $region29: #{tpu_custom_call.1} parent=1 // pred_fallthru
      _
    // Predicated region
    $region30: #{tpu_custom_call.1} parent=1 // pred_check
      _
    $region31: #{tpu_custom_call.1} parent=1 // pred_check_branch
      %136 = sbr.rel (0) target = $region33
    $region32: #{tpu_custom_call.1} parent=1 // pred_region
      %137 = dma.done [#allocation5], 16
    $region33: #{tpu_custom_call.1} parent=1 // pred_fallthru
      _
    %138 = sfence
    %139 = vsyncpa [#allocation4], 1
    %140 = vsyncpa [#allocation7], 1
    %141 = vsyncpa [#allocation5], 1

</llo_original>
